<compile_context>
chip_gen: v7x
topology: tpu7x:2x2x1
jax: 0.10.0
libtpu: 0.0.40
codegen_flags: <defaults>
</compile_context>

<pallas_src>
import functools

import jax
import jax.numpy as jnp
from jax.experimental import pallas as pl
from jax.experimental.pallas import tpu as pltpu


LANE = 128          # lane width / MXU alignment for padded feature dims
SUBLANE_F32 = 8     # f32 sublane packing (row-tile granularity)
TILE_M_MAX = 4096   # row tile; per-tile working set ~10 MiB, safe on v5e/v6e/v7x


def _round_up(x, m):
    return ((x + m - 1) // m) * m


def _dense_embedding_kernel(num_hidden_layers,
                            x_ref, w0_ref, b0_ref, wh_ref, bh_ref,
                            wf_ref, bf_ref, o_ref):
    """Fused MLP on one row tile.

    x_ref  : (TILE_M, in_features)   f32   VMEM (pipelined over the grid)
    w0_ref : (in_features, h_p)      bf16  VMEM (resident)
    b0_ref : (1, h_p)                f32   VMEM (resident)
    wh_ref : (L, h_p, h_p)           bf16  VMEM (resident)
    bh_ref : (L, 1, h_p)             f32   VMEM (resident)
    wf_ref : (h_p, out_features)     bf16  VMEM (resident)
    bf_ref : (1, out_features)       f32   VMEM (resident)
    o_ref  : (TILE_M, out_features)  f32   VMEM (pipelined over the grid)
    """
    # initial layer: cast x to bf16 in-kernel, MXU matmul with f32 accumulation
    x = x_ref[...].astype(jnp.bfloat16)
    h = jnp.dot(x, w0_ref[...], preferred_element_type=jnp.float32)
    h = jnp.maximum(h + b0_ref[...], 0.0)            # f32 bias + ReLU (VPU)

    # hidden layers (static Python unroll: matmuls fully visible to scheduler)
    for i in range(num_hidden_layers):
        h = jnp.dot(h.astype(wh_ref.dtype), wh_ref[i],
                    preferred_element_type=jnp.float32)
        h = jnp.maximum(h + bh_ref[i], 0.0)           # bh_ref[i] is (1, h_p)

    # final layer (no activation); store only the real out_features columns
    out = jnp.dot(h.astype(wf_ref.dtype), wf_ref[...],
                  preferred_element_type=jnp.float32)
    o_ref[...] = (out + bf_ref[...]).astype(o_ref.dtype)


def prepare_dense_embedding_params(params):
    """One-time padding / casting of logical f32 params (weights are (in, out)).

    Only the contraction / hidden dims are padded to 128 lanes; in_features
    (x's K dim) and out_features (output's N dim) stay logical so x and the
    output can be passed through the pallas_call unpadded.  Zero bias padding
    keeps the padded hidden lanes exactly 0 through every ReLU.
    """
    w0, b0, wh, bh, wf, bf = params
    in_features, hidden = w0.shape
    out_features = wf.shape[1]
    num_hidden_layers = wh.shape[0]
    h_p = _round_up(hidden, LANE)

    w0p = (jnp.zeros((in_features, h_p), jnp.float32)
           .at[:, :hidden].set(w0).astype(jnp.bfloat16))
    b0p = jnp.zeros((1, h_p), jnp.float32).at[0, :hidden].set(b0)
    whp = (jnp.zeros((num_hidden_layers, h_p, h_p), jnp.float32)
           .at[:, :hidden, :hidden].set(wh).astype(jnp.bfloat16))
    bhp = (jnp.zeros((num_hidden_layers, 1, h_p), jnp.float32)
           .at[:, 0, :hidden].set(bh))
    wfp = (jnp.zeros((h_p, out_features), jnp.float32)
           .at[:hidden, :].set(wf).astype(jnp.bfloat16))
    bfp = bf.reshape(1, out_features).astype(jnp.float32)

    return (w0p, b0p, whp, bhp, wfp, bfp)


def dense_embedding_forward(x, prepared_params, *, tile_m_max=TILE_M_MAX):
    """Apply the DenseEmbedding MLP to the last axis of x via one Pallas call."""
    w0p, b0p, whp, bhp, wfp, bfp = prepared_params
    in_features, h_p = w0p.shape
    out_features = wfp.shape[1]
    num_hidden_layers = whp.shape[0]
    assert x.shape[-1] == in_features

    # ---- flatten leading dims; no row padding, ragged last block is fine ----
    lead_shape = x.shape[:-1]
    m = 1
    for d in lead_shape:
        m *= d
    x2d = x.reshape(m, in_features).astype(jnp.float32)

    # Row tile: >=2 grid steps when possible (two-TC sharding on v7x),
    # sublane-aligned, capped so VMEM stays well under the limit.
    tile_m = min(tile_m_max, _round_up(pl.cdiv(m, 2), SUBLANE_F32))
    tile_m = max(tile_m, SUBLANE_F32)
    grid = (pl.cdiv(m, tile_m),)

    # ---- advisory cost estimate for the XLA scheduler ----
    flops = 2 * m * (in_features * h_p
                     + num_hidden_layers * h_p * h_p
                     + h_p * out_features)
    bytes_accessed = (x2d.size * 4 + m * out_features * 4
                      + (w0p.size + whp.size + wfp.size) * 2
                      + (b0p.size + bhp.size + bfp.size) * 4)

    kernel = functools.partial(_dense_embedding_kernel, num_hidden_layers)

    out2d = pl.pallas_call(
        kernel,
        out_shape=jax.ShapeDtypeStruct((m, out_features), jnp.float32),
        grid=grid,
        in_specs=[
            # x: pipelined over rows; last dim == full array dim (no padding)
            pl.BlockSpec((tile_m, in_features), lambda i: (i, 0)),
            # weights / biases: constant block index -> resident in VMEM
            pl.BlockSpec((in_features, h_p), lambda i: (0, 0)),
            pl.BlockSpec((1, h_p), lambda i: (0, 0)),
            pl.BlockSpec((num_hidden_layers, h_p, h_p), lambda i: (0, 0, 0)),
            pl.BlockSpec((num_hidden_layers, 1, h_p), lambda i: (0, 0, 0)),
            pl.BlockSpec((h_p, out_features), lambda i: (0, 0)),
            pl.BlockSpec((1, out_features), lambda i: (0, 0)),
        ],
        out_specs=pl.BlockSpec((tile_m, out_features), lambda i: (i, 0)),
        compiler_params=pltpu.CompilerParams(
            dimension_semantics=("parallel",),       # megacore sharding on v7x
            vmem_limit_bytes=32 * 1024 * 1024,       # safe on v7x's 64 MiB VMEM
        ),
        cost_estimate=pl.CostEstimate(
            flops=flops, transcendentals=0, bytes_accessed=bytes_accessed),
    )(x2d, w0p, b0p, whp, bhp, wfp, bfp)

    return out2d.reshape(*lead_shape, out_features)


def init_dense_embedding_params(key, in_features, out_features,
                                hidden_layer_size=100, num_hidden_layers=3):
    """Deterministic init matching nn.Linear's U(-1/sqrt(fan_in), 1/sqrt(fan_in)).

    Weights are stored pre-transposed as (fan_in, fan_out).
    """
    keys = jax.random.split(key, 2 * (num_hidden_layers + 2))

    def linear(kw, kb, fan_in, fan_out):
        bound = 1.0 / jnp.sqrt(jnp.float32(fan_in))
        w = jax.random.uniform(kw, (fan_in, fan_out), jnp.float32, -bound, bound)
        b = jax.random.uniform(kb, (fan_out,), jnp.float32, -bound, bound)
        return w, b

    w0, b0 = linear(keys[0], keys[1], in_features, hidden_layer_size)

    wh_list, bh_list = [], []
    for i in range(num_hidden_layers):
        w, b = linear(keys[2 + 2 * i], keys[3 + 2 * i],
                      hidden_layer_size, hidden_layer_size)
        wh_list.append(w)
        bh_list.append(b)
    wh = jnp.stack(wh_list)          # (num_hidden, hidden, hidden)
    bh = jnp.stack(bh_list)          # (num_hidden, hidden)

    wf, bf = linear(keys[-2], keys[-1], hidden_layer_size, out_features)
    return (w0, b0, wh, bh, wf, bf)


def dense_embedding_reference(x, params, *, bf16_matmul=False):
    """Pure-JAX reference of the PyTorch forward pass.

    With bf16_matmul=True the matmul operands are cast to bf16 (f32 accumulate)
    to match the kernel's MXU precision exactly.
    """
    w0, b0, wh, bh, wf, bf = params

    def mm(a, w):
        if bf16_matmul:
            return jnp.dot(a.astype(jnp.bfloat16), w.astype(jnp.bfloat16),
                           preferred_element_type=jnp.float32)
        return jnp.dot(a, w, preferred_element_type=jnp.float32)

    h = jax.nn.relu(mm(x, w0) + b0)
    for i in range(wh.shape[0]):
        h = jax.nn.relu(mm(h, wh[i]) + bh[i])
    return mm(h, wf) + bf


if __name__ == "__main__":
    # Small shapes consistent with the module: last dim = in_features.
    batch, channels = 2, 4
    in_features = 16
    hidden_layer_size = 32
    num_hidden_layers = 3
    out_features = 8

    key = jax.random.PRNGKey(0)
    k_x, k_p = jax.random.split(key)

    x = jax.random.normal(k_x, (batch, channels, in_features), jnp.float32)
    params = init_dense_embedding_params(
        k_p, in_features, out_features,
        hidden_layer_size=hidden_layer_size,
        num_hidden_layers=num_hidden_layers,
    )

    # One-time parameter padding/casting (hoisted out of the per-call path).
    prepared = prepare_dense_embedding_params(params)
    prepared = jax.block_until_ready(prepared)

    out = dense_embedding_forward(x, prepared)
    out = jax.block_until_ready(out)
    assert out.shape == (batch, channels, out_features), out.shape

    # Tight check against a bf16-matmul-matched reference (same MXU precision).
    ref_bf16 = dense_embedding_reference(x, params, bf16_matmul=True)
    assert jnp.allclose(out, ref_bf16, atol=1e-3, rtol=1e-3), (
        float(jnp.max(jnp.abs(out - ref_bf16))))

    # Looser semantic check against the full-f32 module forward.
    ref_f32 = dense_embedding_reference(x, params, bf16_matmul=False)
    assert jnp.allclose(out, ref_f32, atol=5e-2, rtol=5e-2), (
        float(jnp.max(jnp.abs(out - ref_f32))))

    print("KERNEL_OK")
</pallas_src>

<mosaic_0001>
module attributes {stable_mosaic.version = 11 : i64} {
  func.func @_dense_embedding_kernel(%arg0: i32, %arg1: memref<8x16xf32, #tpu.memory_space<vmem>>, %arg2: memref<16x128xbf16, #tpu.memory_space<vmem>>, %arg3: memref<1x128xf32, #tpu.memory_space<vmem>>, %arg4: memref<3x128x128xbf16, #tpu.memory_space<vmem>>, %arg5: memref<3x1x128xf32, #tpu.memory_space<vmem>>, %arg6: memref<128x8xbf16, #tpu.memory_space<vmem>>, %arg7: memref<1x8xf32, #tpu.memory_space<vmem>>, %arg8: memref<8x8xf32, #tpu.memory_space<vmem>>) attributes {dimension_semantics = [#tpu.dimension_semantics<parallel>], iteration_bounds = array<i64: 1>, scalar_prefetch = 0 : i64, scratch_operands = 0 : i64, tpu.core_type = #tpu.core_type<tc>, window_params = [{transform_indices = @transform_0, window_bounds = array<i64: 8, 16>}, {pipeline_mode = #tpu.pipeline_mode<synchronous>, transform_indices = @transform_1, window_bounds = array<i64: 16, 128>}, {pipeline_mode = #tpu.pipeline_mode<synchronous>, transform_indices = @transform_2, window_bounds = array<i64: 1, 128>}, {pipeline_mode = #tpu.pipeline_mode<synchronous>, transform_indices = @transform_3, window_bounds = array<i64: 3, 128, 128>}, {pipeline_mode = #tpu.pipeline_mode<synchronous>, transform_indices = @transform_4, window_bounds = array<i64: 3, 1, 128>}, {pipeline_mode = #tpu.pipeline_mode<synchronous>, transform_indices = @transform_5, window_bounds = array<i64: 128, 8>}, {pipeline_mode = #tpu.pipeline_mode<synchronous>, transform_indices = @transform_6, window_bounds = array<i64: 1, 8>}, {transform_indices = @transform_7, window_bounds = array<i64: 8, 8>}]} {
    %c0 = arith.constant 0 : index
    %c0_0 = arith.constant 0 : index
    %0 = vector.load %arg1[%c0, %c0_0] : memref<8x16xf32, #tpu.memory_space<vmem>>, vector<8x16xf32>
    %1 = arith.truncf %0 : vector<8x16xf32> to vector<8x16xbf16>
    %c0_1 = arith.constant 0 : index
    %c0_2 = arith.constant 0 : index
    %2 = vector.load %arg2[%c0_1, %c0_2] : memref<16x128xbf16, #tpu.memory_space<vmem>>, vector<16x128xbf16>
    %cst = arith.constant dense<0.000000e+00> : vector<8x128xf32>
    %3 = tpu.matmul %1, %2, %cst {dimension_numbers = #tpu.dot_dimension_numbers<[1], [0], [0], [1], [0, 0, 1, 1], [], []>} : vector<8x16xbf16>, vector<16x128xbf16>, vector<8x128xf32> -> vector<8x128xf32>
    %c0_3 = arith.constant 0 : index
    %c0_4 = arith.constant 0 : index
    %4 = vector.load %arg3[%c0_3, %c0_4] : memref<1x128xf32, #tpu.memory_space<vmem>>, vector<1x128xf32>
    %5 = vector.broadcast %4 : vector<1x128xf32> to vector<8x128xf32>
    %6 = arith.addf %3, %5 : vector<8x128xf32>
    %cst_5 = arith.constant 0.000000e+00 : f32
    %7 = vector.broadcast %cst_5 : f32 to vector<8x128xf32>
    %8 = arith.maximumf %6, %7 : vector<8x128xf32>
    %9 = arith.truncf %8 : vector<8x128xf32> to vector<8x128xbf16>
    %c0_6 = arith.constant 0 : index
    %c0_7 = arith.constant 0 : index
    %c0_8 = arith.constant 0 : index
    %10 = vector.load %arg4[%c0_6, %c0_7, %c0_8] : memref<3x128x128xbf16, #tpu.memory_space<vmem>>, vector<1x128x128xbf16>
    %11 = vector.shape_cast %10 : vector<1x128x128xbf16> to vector<128x128xbf16>
    %cst_9 = arith.constant dense<0.000000e+00> : vector<8x128xf32>
    %12 = tpu.matmul %9, %11, %cst_9 {dimension_numbers = #tpu.dot_dimension_numbers<[1], [0], [0], [1], [0, 0, 1, 1], [], []>} : vector<8x128xbf16>, vector<128x128xbf16>, vector<8x128xf32> -> vector<8x128xf32>
    %c0_10 = arith.constant 0 : index
    %c0_11 = arith.constant 0 : index
    %c0_12 = arith.constant 0 : index
    %13 = vector.load %arg5[%c0_10, %c0_11, %c0_12] : memref<3x1x128xf32, #tpu.memory_space<vmem>>, vector<1x1x128xf32>
    %14 = vector.shape_cast %13 : vector<1x1x128xf32> to vector<1x128xf32>
    %15 = vector.broadcast %14 : vector<1x128xf32> to vector<8x128xf32>
    %16 = arith.addf %12, %15 : vector<8x128xf32>
    %cst_13 = arith.constant 0.000000e+00 : f32
    %17 = vector.broadcast %cst_13 : f32 to vector<8x128xf32>
    %18 = arith.maximumf %16, %17 : vector<8x128xf32>
    %19 = arith.truncf %18 : vector<8x128xf32> to vector<8x128xbf16>
    %c1 = arith.constant 1 : index
    %c0_14 = arith.constant 0 : index
    %c0_15 = arith.constant 0 : index
    %20 = vector.load %arg4[%c1, %c0_14, %c0_15] : memref<3x128x128xbf16, #tpu.memory_space<vmem>>, vector<1x128x128xbf16>
    %21 = vector.shape_cast %20 : vector<1x128x128xbf16> to vector<128x128xbf16>
    %cst_16 = arith.constant dense<0.000000e+00> : vector<8x128xf32>
    %22 = tpu.matmul %19, %21, %cst_16 {dimension_numbers = #tpu.dot_dimension_numbers<[1], [0], [0], [1], [0, 0, 1, 1], [], []>} : vector<8x128xbf16>, vector<128x128xbf16>, vector<8x128xf32> -> vector<8x128xf32>
    %c1_17 = arith.constant 1 : index
    %c0_18 = arith.constant 0 : index
    %c0_19 = arith.constant 0 : index
    %23 = vector.load %arg5[%c1_17, %c0_18, %c0_19] : memref<3x1x128xf32, #tpu.memory_space<vmem>>, vector<1x1x128xf32>
    %24 = vector.shape_cast %23 : vector<1x1x128xf32> to vector<1x128xf32>
    %25 = vector.broadcast %24 : vector<1x128xf32> to vector<8x128xf32>
    %26 = arith.addf %22, %25 : vector<8x128xf32>
    %cst_20 = arith.constant 0.000000e+00 : f32
    %27 = vector.broadcast %cst_20 : f32 to vector<8x128xf32>
    %28 = arith.maximumf %26, %27 : vector<8x128xf32>
    %29 = arith.truncf %28 : vector<8x128xf32> to vector<8x128xbf16>
    %c2 = arith.constant 2 : index
    %c0_21 = arith.constant 0 : index
    %c0_22 = arith.constant 0 : index
    %30 = vector.load %arg4[%c2, %c0_21, %c0_22] : memref<3x128x128xbf16, #tpu.memory_space<vmem>>, vector<1x128x128xbf16>
    %31 = vector.shape_cast %30 : vector<1x128x128xbf16> to vector<128x128xbf16>
    %cst_23 = arith.constant dense<0.000000e+00> : vector<8x128xf32>
    %32 = tpu.matmul %29, %31, %cst_23 {dimension_numbers = #tpu.dot_dimension_numbers<[1], [0], [0], [1], [0, 0, 1, 1], [], []>} : vector<8x128xbf16>, vector<128x128xbf16>, vector<8x128xf32> -> vector<8x128xf32>
    %c2_24 = arith.constant 2 : index
    %c0_25 = arith.constant 0 : index
    %c0_26 = arith.constant 0 : index
    %33 = vector.load %arg5[%c2_24, %c0_25, %c0_26] : memref<3x1x128xf32, #tpu.memory_space<vmem>>, vector<1x1x128xf32>
    %34 = vector.shape_cast %33 : vector<1x1x128xf32> to vector<1x128xf32>
    %35 = vector.broadcast %34 : vector<1x128xf32> to vector<8x128xf32>
    %36 = arith.addf %32, %35 : vector<8x128xf32>
    %cst_27 = arith.constant 0.000000e+00 : f32
    %37 = vector.broadcast %cst_27 : f32 to vector<8x128xf32>
    %38 = arith.maximumf %36, %37 : vector<8x128xf32>
    %39 = arith.truncf %38 : vector<8x128xf32> to vector<8x128xbf16>
    %c0_28 = arith.constant 0 : index
    %c0_29 = arith.constant 0 : index
    %40 = vector.load %arg6[%c0_28, %c0_29] : memref<128x8xbf16, #tpu.memory_space<vmem>>, vector<128x8xbf16>
    %cst_30 = arith.constant dense<0.000000e+00> : vector<8x8xf32>
    %41 = tpu.matmul %39, %40, %cst_30 {dimension_numbers = #tpu.dot_dimension_numbers<[1], [0], [0], [1], [0, 0, 1, 1], [], []>} : vector<8x128xbf16>, vector<128x8xbf16>, vector<8x8xf32> -> vector<8x8xf32>
    %c0_31 = arith.constant 0 : index
    %c0_32 = arith.constant 0 : index
    %42 = vector.load %arg7[%c0_31, %c0_32] : memref<1x8xf32, #tpu.memory_space<vmem>>, vector<1x8xf32>
    %43 = vector.broadcast %42 : vector<1x8xf32> to vector<8x8xf32>
    %44 = arith.addf %41, %43 : vector<8x8xf32>
    %c0_33 = arith.constant 0 : index
    %c0_34 = arith.constant 0 : index
    %45 = vector.load %arg8[%c0_33, %c0_34] : memref<8x8xf32, #tpu.memory_space<vmem>>, vector<8x8xf32>
    tpu.vector_store %arg8[%c0_33, %c0_34], %44 {strides = array<i32>} : memref<8x8xf32, #tpu.memory_space<vmem>>, vector<8x8xf32>,
    return
  }
  func.func @transform_0(%arg0: i32) -> (i32, i32) {
    %c0_i32 = arith.constant 0 : i32
    %c0_i32_0 = arith.constant 0 : i32
    return %arg0, %c0_i32 : i32, i32
  }
  func.func @transform_1(%arg0: i32) -> (i32, i32) {
    %c0_i32 = arith.constant 0 : i32
    %c0_i32_0 = arith.constant 0 : i32
    %c0_i32_1 = arith.constant 0 : i32
    return %c0_i32, %c0_i32_0 : i32, i32
  }
  func.func @transform_2(%arg0: i32) -> (i32, i32) {
    %c0_i32 = arith.constant 0 : i32
    %c0_i32_0 = arith.constant 0 : i32
    %c0_i32_1 = arith.constant 0 : i32
    return %c0_i32, %c0_i32_0 : i32, i32
  }
  func.func @transform_3(%arg0: i32) -> (i32, i32, i32) {
    %c0_i32 = arith.constant 0 : i32
    %c0_i32_0 = arith.constant 0 : i32
    %c0_i32_1 = arith.constant 0 : i32
    %c0_i32_2 = arith.constant 0 : i32
    return %c0_i32, %c0_i32_0, %c0_i32_1 : i32, i32, i32
  }
  func.func @transform_4(%arg0: i32) -> (i32, i32, i32) {
    %c0_i32 = arith.constant 0 : i32
    %c0_i32_0 = arith.constant 0 : i32
    %c0_i32_1 = arith.constant 0 : i32
    %c0_i32_2 = arith.constant 0 : i32
    return %c0_i32, %c0_i32_0, %c0_i32_1 : i32, i32, i32
  }
  func.func @transform_5(%arg0: i32) -> (i32, i32) {
    %c0_i32 = arith.constant 0 : i32
    %c0_i32_0 = arith.constant 0 : i32
    %c0_i32_1 = arith.constant 0 : i32
    return %c0_i32, %c0_i32_0 : i32, i32
  }
  func.func @transform_6(%arg0: i32) -> (i32, i32) {
    %c0_i32 = arith.constant 0 : i32
    %c0_i32_0 = arith.constant 0 : i32
    %c0_i32_1 = arith.constant 0 : i32
    return %c0_i32, %c0_i32_0 : i32, i32
  }
  func.func @transform_7(%arg0: i32) -> (i32, i32) {
    %c0_i32 = arith.constant 0 : i32
    %c0_i32_0 = arith.constant 0 : i32
    return %arg0, %c0_i32 : i32, i32
  }
}

</mosaic_0001>

<llo_original>
// kernel: tpu_custom_call.1
$region0: #{tpu_custom_call.1}
  #allocation0 [shape = 'u32[]', space=smem, size = 0x4, offset = 0x4, fixed_abs, tag = 'smem constant byte address 0x4 - core index']
  #allocation1 [shape = 'u32[144,128]{1,0:T(1,128)}', space=vmem, size = 0x12000, scoped, tag = 'internal scratch']
  %s0 = inlined_call_operand.vmem [shape: f32[8,16], index: 0, kind: input, shape index: {}]
  %s1 = inlined_call_operand.vmem [shape: bf16[16,128], index: 1, kind: input, shape index: {}]
  %s2 = inlined_call_operand.vmem [shape: f32[1,128], index: 2, kind: input, shape index: {}]
  %s3 = inlined_call_operand.hbm [shape: bf16[3,128,128], index: 3, kind: input, shape index: {}]
  %s4 = inlined_call_operand.vmem [shape: f32[3,1,128], index: 4, kind: input, shape index: {}]
  %s5 = inlined_call_operand.vmem [shape: bf16[128,8], index: 5, kind: input, shape index: {}]
  %s6 = inlined_call_operand.vmem [shape: f32[1,8], index: 6, kind: input, shape index: {}]
  %s7 = inlined_call_operand.hbm [shape: f32[8,8], index: 7, kind: output, shape index: {}]
  %s8 = sld [smem:[#allocation0]]
  $region42: #{tpu_custom_call.1} parent=0
    _
  %s10 = ssub.s32 1, %s8
  %s11 = scalar_select 0, %s10, %s8
  $region1: #{tpu_custom_call.1} parent=0
    #allocation2 [shape = 'u8[98304]{0}', space=vmem, size = 0x18000, scoped, tag = 'input window, operand 3, single buffered']
    #allocation3 [shape = 's32[1]{0}', space=sflag, size = 0x4, scoped, tag = 'scoped memory for tpu_custom_call.1']
    #allocation4 [shape = 's32[1]{0}', space=sflag, size = 0x4, scoped, tag = 'scoped memory for tpu_custom_call.1']
    #allocation5 [shape = 'u8[4096]{0}', space=vmem, size = 0x1000, scoped, tag = 'output window, operand 0, single buffered']
    %12 = vsyncpa [#allocation3], 0
    %13 = vsyncpa [#allocation4], 0
    // Predicated region
    $region2: #{tpu_custom_call.1} parent=1 // pred_check
      _
    $region3: #{tpu_custom_call.1} parent=1 // pred_check_branch
      %15 = sbr.rel (0) target = $region5
    $region4: #{tpu_custom_call.1} parent=1 // pred_region
      _
    $region5: #{tpu_custom_call.1} parent=1 // pred_fallthru
      _
    // Predicated region
    $region6: #{tpu_custom_call.1} parent=1 // pred_check
      _
    $region7: #{tpu_custom_call.1} parent=1 // pred_check_branch
      %17 = sbr.rel (0) target = $region9
    $region8: #{tpu_custom_call.1} parent=1 // pred_region
      _
    $region9: #{tpu_custom_call.1} parent=1 // pred_fallthru
      _
    // Predicated region
    $region10: #{tpu_custom_call.1} parent=1 // pred_check
      _
    $region11: #{tpu_custom_call.1} parent=1 // pred_check_branch
      %19 = sbr.rel (0) target = $region13
    $region12: #{tpu_custom_call.1} parent=1 // pred_region
      _
    $region13: #{tpu_custom_call.1} parent=1 // pred_fallthru
      _
    // Predicated region
    $region14: #{tpu_custom_call.1} parent=1 // pred_check
      _
    $region15: #{tpu_custom_call.1} parent=1 // pred_check_branch
      %21 = sbr.rel (0) target = $region17
    $region16: #{tpu_custom_call.1} parent=1 // pred_region
      %s23 = ssub.s32 3072, 3072
      %24 = vsyncadd [#allocation3], %s23
      %s25 = sshll.u32 [#allocation2], 4
      %s26 = int_to_ptr.vmem [resolvable:$true] %s25
      %31 = dma.hbm_to_vmem [thread:$0]  %s3, 3072, %s26, [#allocation3], 64, 64, 4
    $region17: #{tpu_custom_call.1} parent=1 // pred_fallthru
      _
    // Predicated region
    $region18: #{tpu_custom_call.1} parent=1 // pred_check
      _
    $region19: #{tpu_custom_call.1} parent=1 // pred_check_branch
      %33 = sbr.rel (0) target = $region21
    $region20: #{tpu_custom_call.1} parent=1 // pred_region
      _
    $region21: #{tpu_custom_call.1} parent=1 // pred_fallthru
      _
    // Predicated region
    $region22: #{tpu_custom_call.1} parent=1 // pred_check
      _
    $region23: #{tpu_custom_call.1} parent=1 // pred_check_branch
      %35 = sbr.rel (0) target = $region25
    $region24: #{tpu_custom_call.1} parent=1 // pred_region
      _
    $region25: #{tpu_custom_call.1} parent=1 // pred_fallthru
      _
    // Predicated region
    $region26: #{tpu_custom_call.1} parent=1 // pred_check
      _
    $region27: #{tpu_custom_call.1} parent=1 // pred_check_branch
      %37 = sbr.rel (0) target = $region29
    $region28: #{tpu_custom_call.1} parent=1 // pred_region
      _
    $region29: #{tpu_custom_call.1} parent=1 // pred_fallthru
      _
    // Predicated region
    $region30: #{tpu_custom_call.1} parent=1 // pred_check
      _
    $region31: #{tpu_custom_call.1} parent=1 // pred_check_branch
      %39 = sbr.rel (0) target = $region33
    $region32: #{tpu_custom_call.1} parent=1 // pred_region
      %40 = dma.done [#allocation3], 3072
    $region33: #{tpu_custom_call.1} parent=1 // pred_fallthru
      _
    %v42 = vld [vmem:[%s0] sm:$0xff]
    %v43 = vpack.c.bf16 %v42, %v42
    %v44 = vld [vmem:[%s1] sm:$0xf]
    %v45 = vld [vmem:[%s1 + $0x4] sm:$0xf]
    %v46 = vld [vmem:[%s2] sm:$0x1]
    %v48 = vlaneseq
    %v49 = vshrl.u32 %v48, 7
    %v50 = vsub.s32 0, %v49
    %v51 = vrot.slane %v46, %v50
    %v55 = vunpack.c.l.b16 %v44
    %v56 = vunpack.c.l.b16 %v45
    %v57 = vpack.c.b16 %v56, %v55
    %vm59 = vcmask 130048
    %v61 = vsel %vm59, %v43, 0
    %63 = vmatprep.subr.bf16.mxu0 0
    %64 = vmatpush1.bf16.msra.mxu0 %v57
    %65 = vmatprep.subr.bf16.mxu0 0
    %66 = vmatpush1.bf16.msra.mxu0 0
    %67 = vmatprep.subr.bf16.mxu0 0
    %68 = vmatpush1.bf16.msra.mxu0 0
    %69 = vmatprep.subr.bf16.mxu0 0
    %70 = vmatpush1.bf16.msra.mxu0 0
    %71 = vmatprep.subr.bf16.mxu0 0
    %72 = vmatpush1.bf16.msra.mxu0 0
    %73 = vmatprep.subr.bf16.mxu0 0
    %74 = vmatpush1.bf16.msra.mxu0 0
    %75 = vmatprep.subr.bf16.mxu0 0
    %76 = vmatpush1.bf16.msra.mxu0 0
    %77 = vmatprep.subr.bf16.mxu0 0
    %78 = vmatpush1.bf16.msra.mxu0 0
    %79 = vmatprep.subr.bf16.mxu0 0
    %80 = vmatpush1.bf16.msra.mxu0 0
    %81 = vmatprep.subr.bf16.mxu0 0
    %82 = vmatpush1.bf16.msra.mxu0 0
    %83 = vmatprep.subr.bf16.mxu0 0
    %84 = vmatpush1.bf16.msra.mxu0 0
    %85 = vmatprep.subr.bf16.mxu0 0
    %86 = vmatpush1.bf16.msra.mxu0 0
    %87 = vmatprep.subr.bf16.mxu0 0
    %88 = vmatpush1.bf16.msra.mxu0 0
    %89 = vmatprep.subr.bf16.mxu0 0
    %90 = vmatpush1.bf16.msra.mxu0 0
    %91 = vmatprep.subr.bf16.mxu0 0
    %92 = vmatpush1.bf16.msra.mxu0 0
    %93 = vmatprep.subr.bf16.mxu0 0
    %94 = vmatpush1.bf16.msra.mxu0 0
    %95 = vmatprep.mubr.bf16.mxu0 0
    %96 = vmatmul.mubr.bf16.gmra.mrb[0].mxu0 %v61
    %v97 = vpop.f32.mrb[0].mxu0
    %v98 = vadd.f32 %v51, %v97
    %v99 = vpop.f32.mrb[0].mxu0
    %v100 = vpop.f32.mrb[0].mxu0
    %v101 = vpop.f32.mrb[0].mxu0
    %102 = vdwg.mxu0
    %v103 = vmax.f32 %v98, 0.0
    %v104 = vpack.c.bf16 %v103, %v103
    %v105 = vld [vmem:[#allocation2] sm:$0xf]
    %v106 = vld [vmem:[#allocation2 + $0x4] sm:$0xf]
    %v107 = vld [vmem:[#allocation2 + $0x8] sm:$0xf]
    %v108 = vld [vmem:[#allocation2 + $0xc] sm:$0xf]
    %v109 = vld [vmem:[#allocation2 + $0x10] sm:$0xf]
    %v110 = vld [vmem:[#allocation2 + $0x14] sm:$0xf]
    %v111 = vld [vmem:[#allocation2 + $0x18] sm:$0xf]
    %v112 = vld [vmem:[#allocation2 + $0x1c] sm:$0xf]
    %v113 = vld [vmem:[#allocation2 + $0x20] sm:$0xf]
    %v114 = vld [vmem:[#allocation2 + $0x24] sm:$0xf]
    %v115 = vld [vmem:[#allocation2 + $0x28] sm:$0xf]
    %v116 = vld [vmem:[#allocation2 + $0x2c] sm:$0xf]
    %v117 = vld [vmem:[#allocation2 + $0x30] sm:$0xf]
    %v118 = vld [vmem:[#allocation2 + $0x34] sm:$0xf]
    %v119 = vld [vmem:[#allocation2 + $0x38] sm:$0xf]
    %v120 = vld [vmem:[#allocation2 + $0x3c] sm:$0xf]
    %v121 = vld [vmem:[%s4] sm:$0x1]
    %v123 = vlaneseq
    %v124 = vshrl.u32 %v123, 7
    %v125 = vsub.s32 0, %v124
    %v126 = vrot.slane %v121, %v125
    %v144 = vunpack.c.l.b16 %v105
    %v145 = vunpack.c.l.b16 %v106
    %v146 = vunpack.c.l.b16 %v107
    %v147 = vunpack.c.l.b16 %v108
    %v148 = vunpack.c.l.b16 %v109
    %v149 = vunpack.c.l.b16 %v110
    %v150 = vunpack.c.l.b16 %v111
    %v151 = vunpack.c.l.b16 %v112
    %v152 = vunpack.c.l.b16 %v113
    %v153 = vunpack.c.l.b16 %v114
    %v154 = vunpack.c.l.b16 %v115
    %v155 = vunpack.c.l.b16 %v116
    %v156 = vunpack.c.l.b16 %v117
    %v157 = vunpack.c.l.b16 %v118
    %v158 = vunpack.c.l.b16 %v119
    %v159 = vunpack.c.l.b16 %v120
    %v160 = vpack.c.b16 %v145, %v144
    %v161 = vpack.c.b16 %v147, %v146
    %v162 = vpack.c.b16 %v149, %v148
    %v163 = vpack.c.b16 %v151, %v150
    %v164 = vpack.c.b16 %v153, %v152
    %v165 = vpack.c.b16 %v155, %v154
    %v166 = vpack.c.b16 %v157, %v156
    %v167 = vpack.c.b16 %v159, %v158
    %176 = vmatprep.subr.bf16.mxu0 0
    %177 = vmatpush1.bf16.msra.mxu0 %v160
    %178 = vmatprep.subr.bf16.mxu0 0
    %179 = vmatpush1.bf16.msra.mxu0 %v161
    %180 = vmatprep.subr.bf16.mxu0 0
    %181 = vmatpush1.bf16.msra.mxu0 %v162
    %182 = vmatprep.subr.bf16.mxu0 0
    %183 = vmatpush1.bf16.msra.mxu0 %v163
    %184 = vmatprep.subr.bf16.mxu0 0
    %185 = vmatpush1.bf16.msra.mxu0 %v164
    %186 = vmatprep.subr.bf16.mxu0 0
    %187 = vmatpush1.bf16.msra.mxu0 %v165
    %188 = vmatprep.subr.bf16.mxu0 0
    %189 = vmatpush1.bf16.msra.mxu0 %v166
    %190 = vmatprep.subr.bf16.mxu0 0
    %191 = vmatpush1.bf16.msra.mxu0 %v167
    %192 = vmatprep.subr.bf16.mxu0 0
    %193 = vmatpush1.bf16.msra.mxu0 0
    %194 = vmatprep.subr.bf16.mxu0 0
    %195 = vmatpush1.bf16.msra.mxu0 0
    %196 = vmatprep.subr.bf16.mxu0 0
    %197 = vmatpush1.bf16.msra.mxu0 0
    %198 = vmatprep.subr.bf16.mxu0 0
    %199 = vmatpush1.bf16.msra.mxu0 0
    %200 = vmatprep.subr.bf16.mxu0 0
    %201 = vmatpush1.bf16.msra.mxu0 0
    %202 = vmatprep.subr.bf16.mxu0 0
    %203 = vmatpush1.bf16.msra.mxu0 0
    %204 = vmatprep.subr.bf16.mxu0 0
    %205 = vmatpush1.bf16.msra.mxu0 0
    %206 = vmatprep.subr.bf16.mxu0 0
    %207 = vmatpush1.bf16.msra.mxu0 0
    %208 = vmatprep.mubr.bf16.mxu0 0
    %209 = vmatmul.mubr.bf16.gmra.mrb[0].mxu0 %v104
    %v210 = vpop.f32.mrb[0].mxu0
    %v211 = vadd.f32 %v126, %v210
    %v212 = vpop.f32.mrb[0].mxu0
    %v213 = vpop.f32.mrb[0].mxu0
    %v214 = vpop.f32.mrb[0].mxu0
    %215 = vdwg.mxu0
    %v216 = vmax.f32 %v211, 0.0
    %v217 = vpack.c.bf16 %v216, %v216
    %s218 = scalar_lea.vmem [#allocation2], 64
    %v219 = vld [vmem:[%s218] sm:$0xf]
    %v220 = vld [vmem:[%s218 + $0x4] sm:$0xf]
    %v221 = vld [vmem:[%s218 + $0x8] sm:$0xf]
    %v222 = vld [vmem:[%s218 + $0xc] sm:$0xf]
    %v223 = vld [vmem:[%s218 + $0x10] sm:$0xf]
    %v224 = vld [vmem:[%s218 + $0x14] sm:$0xf]
    %v225 = vld [vmem:[%s218 + $0x18] sm:$0xf]
    %v226 = vld [vmem:[%s218 + $0x1c] sm:$0xf]
    %v227 = vld [vmem:[%s218 + $0x20] sm:$0xf]
    %v228 = vld [vmem:[%s218 + $0x24] sm:$0xf]
    %v229 = vld [vmem:[%s218 + $0x28] sm:$0xf]
    %v230 = vld [vmem:[%s218 + $0x2c] sm:$0xf]
    %v231 = vld [vmem:[%s218 + $0x30] sm:$0xf]
    %v232 = vld [vmem:[%s218 + $0x34] sm:$0xf]
    %v233 = vld [vmem:[%s218 + $0x38] sm:$0xf]
    %v234 = vld [vmem:[%s218 + $0x3c] sm:$0xf]
    %s235 = scalar_lea.vmem %s4, 1
    %v236 = vld [vmem:[%s235] sm:$0x1]
    %v238 = vlaneseq
    %v239 = vshrl.u32 %v238, 7
    %v240 = vsub.s32 0, %v239
    %v241 = vrot.slane %v236, %v240
    %v259 = vunpack.c.l.b16 %v219
    %v260 = vunpack.c.l.b16 %v220
    %v261 = vunpack.c.l.b16 %v221
    %v262 = vunpack.c.l.b16 %v222
    %v263 = vunpack.c.l.b16 %v223
    %v264 = vunpack.c.l.b16 %v224
    %v265 = vunpack.c.l.b16 %v225
    %v266 = vunpack.c.l.b16 %v226
    %v267 = vunpack.c.l.b16 %v227
    %v268 = vunpack.c.l.b16 %v228
    %v269 = vunpack.c.l.b16 %v229
    %v270 = vunpack.c.l.b16 %v230
    %v271 = vunpack.c.l.b16 %v231
    %v272 = vunpack.c.l.b16 %v232
    %v273 = vunpack.c.l.b16 %v233
    %v274 = vunpack.c.l.b16 %v234
    %v275 = vpack.c.b16 %v260, %v259
    %v276 = vpack.c.b16 %v262, %v261
    %v277 = vpack.c.b16 %v264, %v263
    %v278 = vpack.c.b16 %v266, %v265
    %v279 = vpack.c.b16 %v268, %v267
    %v280 = vpack.c.b16 %v270, %v269
    %v281 = vpack.c.b16 %v272, %v271
    %v282 = vpack.c.b16 %v274, %v273
    %291 = vmatprep.subr.bf16.mxu0 0
    %292 = vmatpush1.bf16.msra.mxu0 %v275
    %293 = vmatprep.subr.bf16.mxu0 0
    %294 = vmatpush1.bf16.msra.mxu0 %v276
    %295 = vmatprep.subr.bf16.mxu0 0
    %296 = vmatpush1.bf16.msra.mxu0 %v277
    %297 = vmatprep.subr.bf16.mxu0 0
    %298 = vmatpush1.bf16.msra.mxu0 %v278
    %299 = vmatprep.subr.bf16.mxu0 0
    %300 = vmatpush1.bf16.msra.mxu0 %v279
    %301 = vmatprep.subr.bf16.mxu0 0
    %302 = vmatpush1.bf16.msra.mxu0 %v280
    %303 = vmatprep.subr.bf16.mxu0 0
    %304 = vmatpush1.bf16.msra.mxu0 %v281
    %305 = vmatprep.subr.bf16.mxu0 0
    %306 = vmatpush1.bf16.msra.mxu0 %v282
    %307 = vmatprep.subr.bf16.mxu0 0
    %308 = vmatpush1.bf16.msra.mxu0 0
    %309 = vmatprep.subr.bf16.mxu0 0
    %310 = vmatpush1.bf16.msra.mxu0 0
    %311 = vmatprep.subr.bf16.mxu0 0
    %312 = vmatpush1.bf16.msra.mxu0 0
    %313 = vmatprep.subr.bf16.mxu0 0
    %314 = vmatpush1.bf16.msra.mxu0 0
    %315 = vmatprep.subr.bf16.mxu0 0
    %316 = vmatpush1.bf16.msra.mxu0 0
    %317 = vmatprep.subr.bf16.mxu0 0
    %318 = vmatpush1.bf16.msra.mxu0 0
    %319 = vmatprep.subr.bf16.mxu0 0
    %320 = vmatpush1.bf16.msra.mxu0 0
    %321 = vmatprep.subr.bf16.mxu0 0
    %322 = vmatpush1.bf16.msra.mxu0 0
    %323 = vmatprep.mubr.bf16.mxu0 0
    %324 = vmatmul.mubr.bf16.gmra.mrb[0].mxu0 %v217
    %v325 = vpop.f32.mrb[0].mxu0
    %v326 = vadd.f32 %v241, %v325
    %v327 = vpop.f32.mrb[0].mxu0
    %v328 = vpop.f32.mrb[0].mxu0
    %v329 = vpop.f32.mrb[0].mxu0
    %330 = vdwg.mxu0
    %v331 = vmax.f32 %v326, 0.0
    %v332 = vpack.c.bf16 %v331, %v331
    %s333 = scalar_lea.vmem [#allocation2], 128
    %v334 = vld [vmem:[%s333] sm:$0xf]
    %v335 = vld [vmem:[%s333 + $0x4] sm:$0xf]
    %v336 = vld [vmem:[%s333 + $0x8] sm:$0xf]
    %v337 = vld [vmem:[%s333 + $0xc] sm:$0xf]
    %v338 = vld [vmem:[%s333 + $0x10] sm:$0xf]
    %v339 = vld [vmem:[%s333 + $0x14] sm:$0xf]
    %v340 = vld [vmem:[%s333 + $0x18] sm:$0xf]
    %v341 = vld [vmem:[%s333 + $0x1c] sm:$0xf]
    %v342 = vld [vmem:[%s333 + $0x20] sm:$0xf]
    %v343 = vld [vmem:[%s333 + $0x24] sm:$0xf]
    %v344 = vld [vmem:[%s333 + $0x28] sm:$0xf]
    %v345 = vld [vmem:[%s333 + $0x2c] sm:$0xf]
    %v346 = vld [vmem:[%s333 + $0x30] sm:$0xf]
    %v347 = vld [vmem:[%s333 + $0x34] sm:$0xf]
    %v348 = vld [vmem:[%s333 + $0x38] sm:$0xf]
    %v349 = vld [vmem:[%s333 + $0x3c] sm:$0xf]
    %s350 = scalar_lea.vmem %s4, 2
    %v351 = vld [vmem:[%s350] sm:$0x1]
    %v353 = vlaneseq
    %v354 = vshrl.u32 %v353, 7
    %v355 = vsub.s32 0, %v354
    %v356 = vrot.slane %v351, %v355
    %v374 = vunpack.c.l.b16 %v334
    %v375 = vunpack.c.l.b16 %v335
    %v376 = vunpack.c.l.b16 %v336
    %v377 = vunpack.c.l.b16 %v337
    %v378 = vunpack.c.l.b16 %v338
    %v379 = vunpack.c.l.b16 %v339
    %v380 = vunpack.c.l.b16 %v340
    %v381 = vunpack.c.l.b16 %v341
    %v382 = vunpack.c.l.b16 %v342
    %v383 = vunpack.c.l.b16 %v343
    %v384 = vunpack.c.l.b16 %v344
    %v385 = vunpack.c.l.b16 %v345
    %v386 = vunpack.c.l.b16 %v346
    %v387 = vunpack.c.l.b16 %v347
    %v388 = vunpack.c.l.b16 %v348
    %v389 = vunpack.c.l.b16 %v349
    %v390 = vpack.c.b16 %v375, %v374
    %v391 = vpack.c.b16 %v377, %v376
    %v392 = vpack.c.b16 %v379, %v378
    %v393 = vpack.c.b16 %v381, %v380
    %v394 = vpack.c.b16 %v383, %v382
    %v395 = vpack.c.b16 %v385, %v384
    %v396 = vpack.c.b16 %v387, %v386
    %v397 = vpack.c.b16 %v389, %v388
    %406 = vmatprep.subr.bf16.mxu0 0
    %407 = vmatpush1.bf16.msra.mxu0 %v390
    %408 = vmatprep.subr.bf16.mxu0 0
    %409 = vmatpush1.bf16.msra.mxu0 %v391
    %410 = vmatprep.subr.bf16.mxu0 0
    %411 = vmatpush1.bf16.msra.mxu0 %v392
    %412 = vmatprep.subr.bf16.mxu0 0
    %413 = vmatpush1.bf16.msra.mxu0 %v393
    %414 = vmatprep.subr.bf16.mxu0 0
    %415 = vmatpush1.bf16.msra.mxu0 %v394
    %416 = vmatprep.subr.bf16.mxu0 0
    %417 = vmatpush1.bf16.msra.mxu0 %v395
    %418 = vmatprep.subr.bf16.mxu0 0
    %419 = vmatpush1.bf16.msra.mxu0 %v396
    %420 = vmatprep.subr.bf16.mxu0 0
    %421 = vmatpush1.bf16.msra.mxu0 %v397
    %422 = vmatprep.subr.bf16.mxu0 0
    %423 = vmatpush1.bf16.msra.mxu0 0
    %424 = vmatprep.subr.bf16.mxu0 0
    %425 = vmatpush1.bf16.msra.mxu0 0
    %426 = vmatprep.subr.bf16.mxu0 0
    %427 = vmatpush1.bf16.msra.mxu0 0
    %428 = vmatprep.subr.bf16.mxu0 0
    %429 = vmatpush1.bf16.msra.mxu0 0
    %430 = vmatprep.subr.bf16.mxu0 0
    %431 = vmatpush1.bf16.msra.mxu0 0
    %432 = vmatprep.subr.bf16.mxu0 0
    %433 = vmatpush1.bf16.msra.mxu0 0
    %434 = vmatprep.subr.bf16.mxu0 0
    %435 = vmatpush1.bf16.msra.mxu0 0
    %436 = vmatprep.subr.bf16.mxu0 0
    %437 = vmatpush1.bf16.msra.mxu0 0
    %438 = vmatprep.mubr.bf16.mxu0 0
    %439 = vmatmul.mubr.bf16.gmra.mrb[0].mxu0 %v332
    %v440 = vpop.f32.mrb[0].mxu0
    %v441 = vadd.f32 %v356, %v440
    %v442 = vpop.f32.mrb[0].mxu0
    %v443 = vpop.f32.mrb[0].mxu0
    %v444 = vpop.f32.mrb[0].mxu0
    %445 = vdwg.mxu0
    %v446 = vmax.f32 %v441, 0.0
    %v447 = vpack.c.bf16 %v446, %v446
    %v448 = vld [vmem:[%s5] sm:$0xf]
    %v449 = vld [vmem:[%s5 + $0x4] sm:$0xf]
    %v450 = vld [vmem:[%s5 + $0x8] sm:$0xf]
    %v451 = vld [vmem:[%s5 + $0xc] sm:$0xf]
    %v452 = vld [vmem:[%s5 + $0x10] sm:$0xf]
    %v453 = vld [vmem:[%s5 + $0x14] sm:$0xf]
    %v454 = vld [vmem:[%s5 + $0x18] sm:$0xf]
    %v455 = vld [vmem:[%s5 + $0x1c] sm:$0xf]
    %v456 = vld [vmem:[%s5 + $0x20] sm:$0xf]
    %v457 = vld [vmem:[%s5 + $0x24] sm:$0xf]
    %v458 = vld [vmem:[%s5 + $0x28] sm:$0xf]
    %v459 = vld [vmem:[%s5 + $0x2c] sm:$0xf]
    %v460 = vld [vmem:[%s5 + $0x30] sm:$0xf]
    %v461 = vld [vmem:[%s5 + $0x34] sm:$0xf]
    %v462 = vld [vmem:[%s5 + $0x38] sm:$0xf]
    %v463 = vld [vmem:[%s5 + $0x3c] sm:$0xf]
    %v464 = vld [vmem:[%s6] sm:$0x1]
    %v466 = vlaneseq
    %v467 = vshrl.u32 %v466, 7
    %v468 = vsub.s32 0, %v467
    %v469 = vrot.slane %v464, %v468
    %v487 = vunpack.c.l.b16 %v448
    %v488 = vunpack.c.l.b16 %v449
    %v489 = vunpack.c.l.b16 %v450
    %v490 = vunpack.c.l.b16 %v451
    %v491 = vunpack.c.l.b16 %v452
    %v492 = vunpack.c.l.b16 %v453
    %v493 = vunpack.c.l.b16 %v454
    %v494 = vunpack.c.l.b16 %v455
    %v495 = vunpack.c.l.b16 %v456
    %v496 = vunpack.c.l.b16 %v457
    %v497 = vunpack.c.l.b16 %v458
    %v498 = vunpack.c.l.b16 %v459
    %v499 = vunpack.c.l.b16 %v460
    %v500 = vunpack.c.l.b16 %v461
    %v501 = vunpack.c.l.b16 %v462
    %v502 = vunpack.c.l.b16 %v463
    %v503 = vpack.c.b16 %v488, %v487
    %v504 = vpack.c.b16 %v490, %v489
    %v505 = vpack.c.b16 %v492, %v491
    %v506 = vpack.c.b16 %v494, %v493
    %v507 = vpack.c.b16 %v496, %v495
    %v508 = vpack.c.b16 %v498, %v497
    %v509 = vpack.c.b16 %v500, %v499
    %v510 = vpack.c.b16 %v502, %v501
    %519 = vmatprep.subr.bf16.mxu0 0
    %520 = vmatpush1.bf16.msra.mxu0 %v503
    %521 = vmatprep.subr.bf16.mxu0 0
    %522 = vmatpush1.bf16.msra.mxu0 %v504
    %523 = vmatprep.subr.bf16.mxu0 0
    %524 = vmatpush1.bf16.msra.mxu0 %v505
    %525 = vmatprep.subr.bf16.mxu0 0
    %526 = vmatpush1.bf16.msra.mxu0 %v506
    %527 = vmatprep.subr.bf16.mxu0 0
    %528 = vmatpush1.bf16.msra.mxu0 %v507
    %529 = vmatprep.subr.bf16.mxu0 0
    %530 = vmatpush1.bf16.msra.mxu0 %v508
    %531 = vmatprep.subr.bf16.mxu0 0
    %532 = vmatpush1.bf16.msra.mxu0 %v509
    %533 = vmatprep.subr.bf16.mxu0 0
    %534 = vmatpush1.bf16.msra.mxu0 %v510
    %535 = vmatprep.subr.bf16.mxu0 0
    %536 = vmatpush1.bf16.msra.mxu0 0
    %537 = vmatprep.subr.bf16.mxu0 0
    %538 = vmatpush1.bf16.msra.mxu0 0
    %539 = vmatprep.subr.bf16.mxu0 0
    %540 = vmatpush1.bf16.msra.mxu0 0
    %541 = vmatprep.subr.bf16.mxu0 0
    %542 = vmatpush1.bf16.msra.mxu0 0
    %543 = vmatprep.subr.bf16.mxu0 0
    %544 = vmatpush1.bf16.msra.mxu0 0
    %545 = vmatprep.subr.bf16.mxu0 0
    %546 = vmatpush1.bf16.msra.mxu0 0
    %547 = vmatprep.subr.bf16.mxu0 0
    %548 = vmatpush1.bf16.msra.mxu0 0
    %549 = vmatprep.subr.bf16.mxu0 0
    %550 = vmatpush1.bf16.msra.mxu0 0
    %551 = vmatprep.mubr.bf16.mxu0 0
    %552 = vmatmul.mubr.bf16.gmra.mrb[0].mxu0 %v447
    %v553 = vpop.f32.mrb[0].mxu0
    %v554 = vadd.f32 %v469, %v553
    %v555 = vpop.f32.mrb[0].mxu0
    %v556 = vpop.f32.mrb[0].mxu0
    %v557 = vpop.f32.mrb[0].mxu0
    %558 = vdwg.mxu0
    %vm559 = vcmask 64512
    %560 = vst.msk [vmem:[#allocation5] sm:$0xff] %vm559, %v554
    // Predicated region
    $region34: #{tpu_custom_call.1} parent=1 // pred_check
      _
    $region35: #{tpu_custom_call.1} parent=1 // pred_check_branch
      %562 = sbr.rel (0) target = $region37
    $region36: #{tpu_custom_call.1} parent=1 // pred_region
      %s564 = ssub.s32 128, 128
      %565 = vsyncadd [#allocation4], %s564
      %s567 = sshll.u32 [#allocation5], 4
      %s568 = int_to_ptr.vmem [resolvable:$true] %s567
      %570 = dma.vmem_to_hbm [thread:$0]  %s568, 128, %s7, [#allocation4]
    $region37: #{tpu_custom_call.1} parent=1 // pred_fallthru
      _
    // Predicated region
    $region38: #{tpu_custom_call.1} parent=1 // pred_check
      _
    $region39: #{tpu_custom_call.1} parent=1 // pred_check_branch
      %572 = sbr.rel (0) target = $region41
    $region40: #{tpu_custom_call.1} parent=1 // pred_region
      %573 = dma.done [#allocation4], 128
    $region41: #{tpu_custom_call.1} parent=1 // pred_fallthru
      _
    %574 = vsyncpa [#allocation3], 1
    %575 = vsyncpa [#allocation4], 1

</llo_original>
